<compile_context>
chip_gen: v5e
topology: v5e:2x2
jax: 0.10.0
libtpu: 0.0.40
codegen_flags: <defaults>
</compile_context>

<pallas_src>
import math
import numpy as np

import jax
import jax.numpy as jnp
from jax.experimental import pallas as pl
from jax.experimental.pallas import tpu as pltpu


# ----------------------- host-side constant construction -----------------------

def _sph_jn(n, r):
    """Spherical Bessel j_n(r) for small n (upward recurrence), r > 0."""
    r = np.asarray(r, dtype=np.float64)
    j0 = np.sin(r) / r
    if n == 0:
        return j0
    j1 = np.sin(r) / r**2 - np.cos(r) / r
    if n == 1:
        return j1
    jm1, jc = j0, j1
    for l in range(1, n):
        jp1 = (2 * l + 1) / r * jc - jm1
        jm1, jc = jc, jp1
    return jc


def _bisect(f, lo, hi, iters=200):
    flo = f(lo)
    for _ in range(iters):
        mid = 0.5 * (lo + hi)
        fm = f(mid)
        if flo * fm <= 0:
            hi = mid
        else:
            lo, flo = mid, fm
    return 0.5 * (lo + hi)


def _jn_zeros(n, k):
    """First k positive zeros of j_0 .. j_{n-1} (interlacing bracketing)."""
    zerosj = np.zeros((n, k), dtype=np.float64)
    zerosj[0] = np.arange(1, k + 1) * np.pi
    points = np.arange(1, k + n) * np.pi
    for i in range(1, n):
        racines = np.zeros(len(points) - 1, dtype=np.float64)
        for j in range(len(points) - 1):
            racines[j] = _bisect(lambda r: _sph_jn(i, r), points[j], points[j + 1])
        points = racines
        zerosj[i, :k] = racines[:k]
    return zerosj


def _bessel_constants(num_spherical, num_radial):
    zeros = _jn_zeros(num_spherical, num_radial)          # (n, k)
    norms = np.zeros_like(zeros)
    for i in range(num_spherical):
        for j in range(num_radial):
            norms[i, j] = 1.0 / np.sqrt(0.5 * _sph_jn(i + 1, zeros[i, j]) ** 2)
    return zeros, norms


def _build_tables(num_spherical, num_radial, g, Lw):
    """Constant tables.

    exp  : ((2+n)*g, 3*Lw) expansion matrix.  One MXU matmul of the packed
           narrow inputs against it produces, per packed triplet slot j, three
           lane-wide sections:
             [0,   Lw)   arg = z_{l,m} * x
             [Lw, 2*Lw)  inv = (1/z_{l,m}) * (1/x)         (no in-kernel divide)
             [2Lw,3*Lw)  W   = env(x)*P_l(cos th)*norm_{l,m}*sqrt((2l+1)/4pi)
    mask : (n, Lw) 0/1 per-order masks used to select j_l per lane.
    """
    n, k = num_spherical, num_radial
    nk = n * k
    zeros, norms = _bessel_constants(n, k)
    z_flat = zeros.reshape(-1)                                    # index l*k + m
    sph_pref = np.sqrt((2.0 * np.arange(n) + 1.0) / (4.0 * np.pi))
    w_flat = (norms * sph_pref[:, None]).reshape(-1)

    C = (2 + n) * g
    exp = np.zeros((C, 3 * Lw), dtype=np.float32)
    mask = np.zeros((n, Lw), dtype=np.float32)
    lanes_nk = np.arange(nk)
    for j in range(g):
        base = j * nk
        exp[j, 0 * Lw + base + lanes_nk] = z_flat
        exp[g + j, 1 * Lw + base + lanes_nk] = 1.0 / z_flat
        for l in range(n):
            cols = l * k + np.arange(k)
            exp[2 * g + j * n + l, 2 * Lw + base + cols] = w_flat[cols]
            mask[l, base + cols] = 1.0
    return exp, mask


# --------------------------------- Pallas kernel --------------------------------

def _make_kernel(num_spherical, Lw):
    n = num_spherical

    def kernel(exp_ref, mask_ref, nar_ref, out_ref):
        # Single MXU matmul: lane expansion with z / 1/z / normalizers folded
        # into the constant weights.  HIGHEST precision keeps it accurate to
        # f32 roundoff while the MXU (otherwise idle here) does the shuffle.
        wide = jnp.dot(nar_ref[...], exp_ref[...],
                       preferred_element_type=jnp.float32,
                       precision=jax.lax.Precision.HIGHEST)
        arg = wide[:, 0 * Lw:1 * Lw]          # z * x
        inv = wide[:, 1 * Lw:2 * Lw]          # 1 / (z * x)
        wgt = wide[:, 2 * Lw:3 * Lw]          # env * P_l * normalizer

        s = jnp.sin(arg)                      # EUP
        co = jnp.cos(arg)                     # EUP

        # Spherical Bessel upward recurrence + per-order masked accumulate.
        j_prev = s * inv                                      # j0
        acc = mask_ref[0:1, :] * j_prev
        if n > 1:
            j_cur = (j_prev - co) * inv                       # j1
            acc = acc + mask_ref[1:2, :] * j_cur
            for l in range(2, n):
                j_next = (2.0 * l - 1.0) * (inv * j_cur) - j_prev
                acc = acc + mask_ref[l:l + 1, :] * j_next
                j_prev, j_cur = j_cur, j_next

        out_ref[...] = (wgt * acc).astype(out_ref.dtype)

    return kernel


# ----------------------------------- wrapper ------------------------------------

def _round_up(v, m):
    return -(-v // m) * m


def _choose_rows_per_step(r_total, cap):
    """Largest-possible row tile (amortizes the ~0.35us/step pipeline overhead),
    with the grid length rounded to an even number of steps (v7x has 2 TCs)."""
    cap = max(8, (cap // 8) * 8)
    if r_total <= 16:
        return min(cap, _round_up(max(r_total, 1), 8))
    steps = max(2, _round_up(-(-r_total // cap), 2))
    return min(cap, _round_up(-(-r_total // steps), 8))


def spherical_basis_forward(dist, angle, idx_kj, *, num_spherical, num_radial,
                            cutoff=5.0, envelope_exponent=5,
                            out_dtype=jnp.float32, max_rows_per_step=2048):
    assert num_radial <= 64
    n, k = num_spherical, num_radial
    nk = n * k
    g = max(1, 128 // nk)                 # triplets packed per sublane row
    L = g * nk                            # useful lanes per packed row
    Lw = _round_up(L, 128)                # lane-padded row width (unmasked vst)
    C = (2 + n) * g                       # width of the packed narrow input

    exp_np, mask_np = _build_tables(n, k, g, Lw)
    exp_tbl = jnp.asarray(exp_np)
    mask_tbl = jnp.asarray(mask_np)

    dist = jnp.asarray(dist, jnp.float32)
    angle = jnp.asarray(angle, jnp.float32)
    idx_kj = jnp.asarray(idx_kj)
    T = angle.shape[0]

    # ---- hoisted per-triplet scalar work (fuses with the gather in XLA) ----
    x = dist[idx_kj] * (1.0 / cutoff)
    inv_x = 1.0 / x       # zero-length edges give inf, same as the reference module
    p = int(envelope_exponent)
    a_e = -(p + 1) * (p + 2) / 2.0
    b_e = p * (p + 2.0)
    c_e = -p * (p + 1) / 2.0
    env = inv_x + (x ** p) * (a_e + x * (b_e + c_e * x))     # Horner form
    env = jnp.where(x < 1.0, env, 0.0)

    ct = jnp.cos(angle)
    P = [jnp.ones_like(ct)]
    if n > 1:
        P.append(ct)
    for l in range(2, n):
        P.append(((2.0 * l - 1.0) * ct * P[l - 1] - (l - 1.0) * P[l - 2]) / l)
    wp = jnp.stack([env * P[l] for l in range(n)], axis=-1)   # (T, n)

    # ---- pack g triplets per row; pad rows so the grid divides evenly ----
    r_total = -(-T // g)
    rows = _choose_rows_per_step(r_total, max(8, max_rows_per_step * 128 // Lw))
    r_pad = _round_up(r_total, rows)
    t_pad = r_pad * g
    pad = t_pad - T
    # Zero padding is safe: the kernel contains no divisions, so padded rows
    # stay finite and are sliced off below.
    x_p = jnp.pad(x, (0, pad)).reshape(r_pad, g)
    ix_p = jnp.pad(inv_x, (0, pad)).reshape(r_pad, g)
    wp_p = jnp.pad(wp, ((0, pad), (0, 0))).reshape(r_pad, g * n)
    nar = jnp.concatenate([x_p, ix_p, wp_p], axis=1)           # (r_pad, C)

    kernel = _make_kernel(n, Lw)
    out = pl.pallas_call(
        kernel,
        out_shape=jax.ShapeDtypeStruct((r_pad, Lw), out_dtype),
        grid=(r_pad // rows,),
        in_specs=[
            # constants: block index never changes -> fetched once
            pl.BlockSpec((C, 3 * Lw), lambda i: (0, 0)),
            pl.BlockSpec((n, Lw), lambda i: (0, 0)),
            pl.BlockSpec((rows, C), lambda i: (i, 0)),
        ],
        out_specs=pl.BlockSpec((rows, Lw), lambda i: (i, 0)),
        compiler_params=pltpu.CompilerParams(
            dimension_semantics=("parallel",),
            vmem_limit_bytes=48 * 1024 * 1024),
    )(exp_tbl, mask_tbl, nar)

    if Lw != L:
        out = out[:, :L]
    # (r_pad, g*nk) -> (t_pad, nk) is a free row-major reshape; drop padding.
    return out.reshape(t_pad, nk)[:T]


# --------------------------------- numpy reference -------------------------------

def _reference(dist, angle, idx_kj, num_spherical, num_radial, cutoff, p):
    zeros, norms = _bessel_constants(num_spherical, num_radial)
    x = np.asarray(dist, np.float64) / cutoff
    a_e = -(p + 1) * (p + 2) / 2.0
    b_e = p * (p + 2.0)
    c_e = -p * (p + 1) / 2.0
    env = 1.0 / x + a_e * x**p + b_e * x**(p + 1) + c_e * x**(p + 2)
    env = np.where(x < 1.0, env, 0.0)
    E = x.shape[0]
    rbf = np.zeros((E, num_spherical, num_radial))
    for i in range(num_spherical):
        for j in range(num_radial):
            rbf[:, i, j] = norms[i, j] * _sph_jn(i, zeros[i, j] * x)
    rbf = env[:, None, None] * rbf
    ct = np.cos(np.asarray(angle, np.float64))
    P = [np.ones_like(ct)]
    if num_spherical > 1:
        P.append(ct)
    for l in range(2, num_spherical):
        P.append(((2 * l - 1) * ct * P[l - 1] - (l - 1) * P[l - 2]) / l)
    cbf = np.stack(
        [np.sqrt((2 * i + 1) / (4 * np.pi)) * P[i] for i in range(num_spherical)], axis=1)
    out = rbf[np.asarray(idx_kj)] * cbf[:, :, None]
    return out.reshape(len(idx_kj), -1)


# ------------------------------------- main --------------------------------------

if __name__ == "__main__":
    num_spherical, num_radial = 4, 8
    cutoff, envelope_exponent = 5.0, 5
    E, T = 16, 8   # E edges (dist), T triplets (angle, idx_kj)

    key = jax.random.PRNGKey(0)
    kd, ka, ki = jax.random.split(key, 3)
    dist = jax.random.uniform(kd, (E,), jnp.float32, minval=1.0, maxval=4.5)
    angle = jax.random.uniform(ka, (T,), jnp.float32, minval=0.0, maxval=math.pi)
    idx_kj = jax.random.randint(ki, (T,), 0, E)

    out = spherical_basis_forward(
        dist, angle, idx_kj,
        num_spherical=num_spherical, num_radial=num_radial,
        cutoff=cutoff, envelope_exponent=envelope_exponent)
    out = jax.block_until_ready(out)

    ref = _reference(np.asarray(dist), np.asarray(angle), np.asarray(idx_kj),
                     num_spherical, num_radial, cutoff, envelope_exponent)
    assert out.shape == (T, num_spherical * num_radial)
    err = float(np.max(np.abs(np.asarray(out) - ref)))
    assert np.allclose(np.asarray(out), ref, rtol=2e-3, atol=5e-5), err
    print("KERNEL_OK")
</pallas_src>

<mosaic_0001>
module attributes {stable_mosaic.version = 11 : i64} {
  func.func @kernel(%arg0: i32, %arg1: memref<24x384xf32, #tpu.memory_space<vmem>>, %arg2: memref<4x128xf32, #tpu.memory_space<vmem>>, %arg3: memref<8x24xf32, #tpu.memory_space<vmem>>, %arg4: memref<8x128xf32, #tpu.memory_space<vmem>>) attributes {dimension_semantics = [#tpu.dimension_semantics<parallel>], iteration_bounds = array<i64: 1>, scalar_prefetch = 0 : i64, scratch_operands = 0 : i64, tpu.core_type = #tpu.core_type<tc>, window_params = [{pipeline_mode = #tpu.pipeline_mode<synchronous>, transform_indices = @transform_0, window_bounds = array<i64: 24, 384>}, {pipeline_mode = #tpu.pipeline_mode<synchronous>, transform_indices = @transform_1, window_bounds = array<i64: 4, 128>}, {transform_indices = @transform_2, window_bounds = array<i64: 8, 24>}, {transform_indices = @transform_3, window_bounds = array<i64: 8, 128>}]} {
    %c0 = arith.constant 0 : index
    %c0_0 = arith.constant 0 : index
    %0 = vector.load %arg3[%c0, %c0_0] : memref<8x24xf32, #tpu.memory_space<vmem>>, vector<8x24xf32>
    %c0_1 = arith.constant 0 : index
    %c0_2 = arith.constant 0 : index
    %1 = vector.load %arg1[%c0_1, %c0_2] : memref<24x384xf32, #tpu.memory_space<vmem>>, vector<24x384xf32>
    %cst = arith.constant dense<0.000000e+00> : vector<8x384xf32>
    %2 = tpu.matmul %0, %1, %cst {dimension_numbers = #tpu.dot_dimension_numbers<[1], [0], [0], [1], [0, 0, 1, 1], [], []>, precision = #tpu.contract_precision<fp32>} : vector<8x24xf32>, vector<24x384xf32>, vector<8x384xf32> -> vector<8x384xf32>
    %3 = vector.extract_strided_slice %2 {offsets = [0, 0], sizes = [8, 128], strides = [1, 1]} : vector<8x384xf32> to vector<8x128xf32>
    %4 = vector.extract_strided_slice %2 {offsets = [0, 128], sizes = [8, 128], strides = [1, 1]} : vector<8x384xf32> to vector<8x128xf32>
    %5 = vector.extract_strided_slice %2 {offsets = [0, 256], sizes = [8, 128], strides = [1, 1]} : vector<8x384xf32> to vector<8x128xf32>
    %6 = math.sin %3 : vector<8x128xf32>
    %7 = math.cos %3 : vector<8x128xf32>
    %8 = arith.mulf %6, %4 : vector<8x128xf32>
    %c0_3 = arith.constant 0 : index
    %c0_4 = arith.constant 0 : index
    %9 = vector.load %arg2[%c0_3, %c0_4] : memref<4x128xf32, #tpu.memory_space<vmem>>, vector<1x128xf32>
    %10 = vector.broadcast %9 : vector<1x128xf32> to vector<8x128xf32>
    %11 = arith.mulf %10, %8 : vector<8x128xf32>
    %12 = arith.subf %8, %7 : vector<8x128xf32>
    %13 = arith.mulf %12, %4 : vector<8x128xf32>
    %c1 = arith.constant 1 : index
    %c0_5 = arith.constant 0 : index
    %14 = vector.load %arg2[%c1, %c0_5] : memref<4x128xf32, #tpu.memory_space<vmem>>, vector<1x128xf32>
    %15 = vector.broadcast %14 : vector<1x128xf32> to vector<8x128xf32>
    %16 = arith.mulf %15, %13 : vector<8x128xf32>
    %17 = arith.addf %11, %16 : vector<8x128xf32>
    %18 = arith.mulf %4, %13 : vector<8x128xf32>
    %cst_6 = arith.constant 3.000000e+00 : f32
    %19 = vector.broadcast %cst_6 : f32 to vector<8x128xf32>
    %20 = arith.mulf %19, %18 : vector<8x128xf32>
    %21 = arith.subf %20, %8 : vector<8x128xf32>
    %c2 = arith.constant 2 : index
    %c0_7 = arith.constant 0 : index
    %22 = vector.load %arg2[%c2, %c0_7] : memref<4x128xf32, #tpu.memory_space<vmem>>, vector<1x128xf32>
    %23 = vector.broadcast %22 : vector<1x128xf32> to vector<8x128xf32>
    %24 = arith.mulf %23, %21 : vector<8x128xf32>
    %25 = arith.addf %17, %24 : vector<8x128xf32>
    %26 = arith.mulf %4, %21 : vector<8x128xf32>
    %cst_8 = arith.constant 5.000000e+00 : f32
    %27 = vector.broadcast %cst_8 : f32 to vector<8x128xf32>
    %28 = arith.mulf %27, %26 : vector<8x128xf32>
    %29 = arith.subf %28, %13 : vector<8x128xf32>
    %c3 = arith.constant 3 : index
    %c0_9 = arith.constant 0 : index
    %30 = vector.load %arg2[%c3, %c0_9] : memref<4x128xf32, #tpu.memory_space<vmem>>, vector<1x128xf32>
    %31 = vector.broadcast %30 : vector<1x128xf32> to vector<8x128xf32>
    %32 = arith.mulf %31, %29 : vector<8x128xf32>
    %33 = arith.addf %25, %32 : vector<8x128xf32>
    %34 = arith.mulf %5, %33 : vector<8x128xf32>
    %c0_10 = arith.constant 0 : index
    %c0_11 = arith.constant 0 : index
    %35 = vector.load %arg4[%c0_10, %c0_11] : memref<8x128xf32, #tpu.memory_space<vmem>>, vector<8x128xf32>
    tpu.vector_store %arg4[%c0_10, %c0_11], %34 {strides = array<i32>} : memref<8x128xf32, #tpu.memory_space<vmem>>, vector<8x128xf32>,
    return
  }
  func.func @transform_0(%arg0: i32) -> (i32, i32) {
    %c0_i32 = arith.constant 0 : i32
    %c0_i32_0 = arith.constant 0 : i32
    %c0_i32_1 = arith.constant 0 : i32
    return %c0_i32, %c0_i32_0 : i32, i32
  }
  func.func @transform_1(%arg0: i32) -> (i32, i32) {
    %c0_i32 = arith.constant 0 : i32
    %c0_i32_0 = arith.constant 0 : i32
    %c0_i32_1 = arith.constant 0 : i32
    return %c0_i32, %c0_i32_0 : i32, i32
  }
  func.func @transform_2(%arg0: i32) -> (i32, i32) {
    %c0_i32 = arith.constant 0 : i32
    %c0_i32_0 = arith.constant 0 : i32
    return %arg0, %c0_i32 : i32, i32
  }
  func.func @transform_3(%arg0: i32) -> (i32, i32) {
    %c0_i32 = arith.constant 0 : i32
    %c0_i32_0 = arith.constant 0 : i32
    return %arg0, %c0_i32 : i32, i32
  }
}

</mosaic_0001>

<llo_original>
// kernel: tpu_custom_call.1
$region0: #{tpu_custom_call.1}
  #allocation0 [shape = 'u32[]', space=smem, size = 0x4, offset = 0x4, fixed_abs, tag = 'smem constant byte address 0x4 - core index']
  #allocation1 [shape = 'u32[72,128]{1,0:T(1,128)}', space=vmem, size = 0x9000, scoped, tag = 'internal scratch']
  %s0 = inlined_call_operand.hbm [shape: f32[24,384], index: 0, kind: input, shape index: {}]
  %s1 = inlined_call_operand.hbm [shape: f32[4,128], index: 1, kind: input, shape index: {}]
  %s2 = inlined_call_operand.hbm [shape: f32[8,24], index: 2, kind: input, shape index: {}]
  %s3 = inlined_call_operand.hbm [shape: f32[8,128], index: 3, kind: output, shape index: {}]
  %s4 = sld [smem:[#allocation0]]
  $region34: #{tpu_custom_call.1} parent=0
    _
  %s6 = ssub.s32 1, %s4
  %s7 = scalar_select 0, %s6, %s4
  $region1: #{tpu_custom_call.1} parent=0
    #allocation2 [shape = 'u8[36864]{0}', space=vmem, size = 0x9000, scoped, tag = 'input window, operand 0, single buffered']
    #allocation3 [shape = 's32[1]{0}', space=sflag, size = 0x4, scoped, tag = 'scoped memory for tpu_custom_call.1']
    #allocation4 [shape = 's32[1]{0}', space=sflag, size = 0x4, scoped, tag = 'scoped memory for tpu_custom_call.1']
    #allocation5 [shape = 'u8[2048]{0}', space=vmem, size = 0x800, scoped, tag = 'input window, operand 1, single buffered']
    #allocation6 [shape = 's32[1]{0}', space=sflag, size = 0x4, scoped, tag = 'scoped memory for tpu_custom_call.1']
    #allocation7 [shape = 'u8[4096]{0}', space=vmem, size = 0x1000, scoped, tag = 'input window, operand 2, single buffered']
    #allocation8 [shape = 'u8[4096]{0}', space=vmem, size = 0x1000, scoped, tag = 'output window, operand 0, single buffered']
    %8 = vsyncpa [#allocation3], 0
    %9 = vsyncpa [#allocation6], 0
    %10 = vsyncpa [#allocation4], 0
    // Predicated region
    $region2: #{tpu_custom_call.1} parent=1 // pred_check
      _
    $region3: #{tpu_custom_call.1} parent=1 // pred_check_branch
      %12 = sbr.rel (0) target = $region5
    $region4: #{tpu_custom_call.1} parent=1 // pred_region
      %14 = vsyncadd [#allocation3], 0
      %s15 = sshll.u32 %s0, 4
      %s16 = int_to_ptr.hbm [resolvable:$true] %s15
      %s17 = sshll.u32 [#allocation2], 4
      %s18 = int_to_ptr.vmem [resolvable:$true] %s17
      %23 = dma.hbm_to_vmem [thread:$0]  %s16, 1152, %s18, [#allocation3], 384, 384, 24
    $region5: #{tpu_custom_call.1} parent=1 // pred_fallthru
      _
    // Predicated region
    $region6: #{tpu_custom_call.1} parent=1 // pred_check
      _
    $region7: #{tpu_custom_call.1} parent=1 // pred_check_branch
      %25 = sbr.rel (0) target = $region9
    $region8: #{tpu_custom_call.1} parent=1 // pred_region
      %27 = vsyncadd [#allocation6], 0
      %s29 = sshll.u32 %s1, 4
      %s30 = int_to_ptr.hbm [resolvable:$true] %s29
      %s31 = sshll.u32 [#allocation5], 4
      %s32 = int_to_ptr.vmem [resolvable:$true] %s31
      %34 = dma.hbm_to_vmem [thread:$0]  %s30, 64, %s32, [#allocation6]
    $region9: #{tpu_custom_call.1} parent=1 // pred_fallthru
      _
    // Predicated region
    $region10: #{tpu_custom_call.1} parent=1 // pred_check
      _
    $region11: #{tpu_custom_call.1} parent=1 // pred_check_branch
      %36 = sbr.rel (0) target = $region13
    $region12: #{tpu_custom_call.1} parent=1 // pred_region
      %38 = vsyncadd [#allocation6], 0
      %s40 = sshll.u32 %s2, 4
      %s41 = int_to_ptr.hbm [resolvable:$true] %s40
      %s42 = sshll.u32 [#allocation7], 4
      %s43 = int_to_ptr.vmem [resolvable:$true] %s42
      %45 = dma.hbm_to_vmem [thread:$0]  %s41, 128, %s43, [#allocation6]
    $region13: #{tpu_custom_call.1} parent=1 // pred_fallthru
      _
    // Predicated region
    $region14: #{tpu_custom_call.1} parent=1 // pred_check
      _
    $region15: #{tpu_custom_call.1} parent=1 // pred_check_branch
      %47 = sbr.rel (0) target = $region17
    $region16: #{tpu_custom_call.1} parent=1 // pred_region
      %49 = dma.done [#allocation3], 1152
    $region17: #{tpu_custom_call.1} parent=1 // pred_fallthru
      _
    // Predicated region
    $region18: #{tpu_custom_call.1} parent=1 // pred_check
      _
    $region19: #{tpu_custom_call.1} parent=1 // pred_check_branch
      %51 = sbr.rel (0) target = $region21
    $region20: #{tpu_custom_call.1} parent=1 // pred_region
      %53 = dma.done [#allocation6], 64
    $region21: #{tpu_custom_call.1} parent=1 // pred_fallthru
      _
    // Predicated region
    $region22: #{tpu_custom_call.1} parent=1 // pred_check
      _
    $region23: #{tpu_custom_call.1} parent=1 // pred_check_branch
      %55 = sbr.rel (0) target = $region25
    $region24: #{tpu_custom_call.1} parent=1 // pred_region
      %57 = dma.done [#allocation6], 128
    $region25: #{tpu_custom_call.1} parent=1 // pred_fallthru
      _
    %v58 = vld [vmem:[#allocation7] sm:$0xff]
    %v59 = vld [vmem:[#allocation2] sm:$0xff]
    %v60 = vld [vmem:[#allocation2 + $0x8] sm:$0xff]
    %v61 = vld [vmem:[#allocation2 + $0x10] sm:$0xff]
    %v62 = vld [vmem:[#allocation2 + $0x18] sm:$0xff]
    %v63 = vld [vmem:[#allocation2 + $0x20] sm:$0xff]
    %v64 = vld [vmem:[#allocation2 + $0x28] sm:$0xff]
    %v65 = vld [vmem:[#allocation2 + $0x30] sm:$0xff]
    %v66 = vld [vmem:[#allocation2 + $0x38] sm:$0xff]
    %v67 = vld [vmem:[#allocation2 + $0x40] sm:$0xff]
    %vm68 = vcmask 195584
    %v70 = vsel %vm68, %v58, 0
    %72 = vmatpush.msra.mxu0 0.0
    %73 = vmatpush.msra.mxu0 0.0
    %74 = vmatpush.msra.mxu0 0.0
    %75 = vmatpush.msra.mxu0 0.0
    %76 = vmatpush.msra.mxu0 0.0
    %77 = vmatpush.msra.mxu0 0.0
    %78 = vmatpush.msra.mxu0 0.0
    %79 = vmatpush.msra.mxu0 0.0
    %80 = vmatpush.msra.mxu0 0.0
    %81 = vmatpush.msra.mxu0 0.0
    %82 = vmatpush.msra.mxu0 0.0
    %83 = vmatpush.msra.mxu0 0.0
    %84 = vmatpush.msra.mxu0 0.0
    %v85 = vand.u32 %v65, 4294901760
    %86 = vmatpush.msra.mxu0 %v85
    %v87 = vand.u32 %v62, 4294901760
    %88 = vmatpush.msra.mxu0 %v87
    %v89 = vand.u32 %v59, 4294901760
    %90 = vmatpush.msra.mxu0 %v89
    %v91 = vand.u32 %v70, 4294901760
    %v92 = vsub.f32 %v70, %v91
    %v93 = vand.u32 %v92, 4294901760
    %v94 = vsub.f32 %v92, %v93
    %v95 = vand.u32 %v94, 4294901760
    %96 = vmatmul.f32.gmra.mxu0 %v95
    %v97 = vpop.f32.mrf.mxu0
    %v98 = vadd.f32 0.0, %v97
    %99 = vdwg.mxu0
    %100 = vmatpush.msra.mxu0 0.0
    %101 = vmatpush.msra.mxu0 0.0
    %102 = vmatpush.msra.mxu0 0.0
    %103 = vmatpush.msra.mxu0 0.0
    %104 = vmatpush.msra.mxu0 0.0
    %105 = vmatpush.msra.mxu0 0.0
    %106 = vmatpush.msra.mxu0 0.0
    %107 = vmatpush.msra.mxu0 0.0
    %108 = vmatpush.msra.mxu0 0.0
    %109 = vmatpush.msra.mxu0 0.0
    %110 = vmatpush.msra.mxu0 0.0
    %111 = vmatpush.msra.mxu0 0.0
    %112 = vmatpush.msra.mxu0 0.0
    %v113 = vand.u32 %v65, 4294901760
    %v114 = vsub.f32 %v65, %v113
    %v115 = vand.u32 %v114, 4294901760
    %v116 = vsub.f32 %v114, %v115
    %v117 = vand.u32 %v116, 4294901760
    %118 = vmatpush.msra.mxu0 %v117
    %v119 = vand.u32 %v62, 4294901760
    %v120 = vsub.f32 %v62, %v119
    %v121 = vand.u32 %v120, 4294901760
    %v122 = vsub.f32 %v120, %v121
    %v123 = vand.u32 %v122, 4294901760
    %124 = vmatpush.msra.mxu0 %v123
    %v125 = vand.u32 %v59, 4294901760
    %v126 = vsub.f32 %v59, %v125
    %v127 = vand.u32 %v126, 4294901760
    %v128 = vsub.f32 %v126, %v127
    %v129 = vand.u32 %v128, 4294901760
    %130 = vmatpush.msra.mxu0 %v129
    %v131 = vand.u32 %v70, 4294901760
    %132 = vmatmul.f32.gmra.mxu0 %v131
    %v133 = vpop.f32.mrf.mxu0
    %v134 = vadd.f32 %v98, %v133
    %135 = vdwg.mxu0
    %136 = vmatpush.msra.mxu0 0.0
    %137 = vmatpush.msra.mxu0 0.0
    %138 = vmatpush.msra.mxu0 0.0
    %139 = vmatpush.msra.mxu0 0.0
    %140 = vmatpush.msra.mxu0 0.0
    %141 = vmatpush.msra.mxu0 0.0
    %142 = vmatpush.msra.mxu0 0.0
    %143 = vmatpush.msra.mxu0 0.0
    %144 = vmatpush.msra.mxu0 0.0
    %145 = vmatpush.msra.mxu0 0.0
    %146 = vmatpush.msra.mxu0 0.0
    %147 = vmatpush.msra.mxu0 0.0
    %148 = vmatpush.msra.mxu0 0.0
    %v149 = vand.u32 %v65, 4294901760
    %v150 = vsub.f32 %v65, %v149
    %151 = vmatpush.msra.mxu0 %v150
    %v152 = vand.u32 %v62, 4294901760
    %v153 = vsub.f32 %v62, %v152
    %154 = vmatpush.msra.mxu0 %v153
    %v155 = vand.u32 %v59, 4294901760
    %v156 = vsub.f32 %v59, %v155
    %157 = vmatpush.msra.mxu0 %v156
    %v158 = vand.u32 %v70, 4294901760
    %v159 = vsub.f32 %v70, %v158
    %160 = vmatmul.f32.gmra.mxu0 %v159
    %v161 = vpop.f32.mrf.mxu0
    %v162 = vadd.f32 %v134, %v161
    %163 = vdwg.mxu0
    %164 = vmatpush.msra.mxu0 0.0
    %165 = vmatpush.msra.mxu0 0.0
    %166 = vmatpush.msra.mxu0 0.0
    %167 = vmatpush.msra.mxu0 0.0
    %168 = vmatpush.msra.mxu0 0.0
    %169 = vmatpush.msra.mxu0 0.0
    %170 = vmatpush.msra.mxu0 0.0
    %171 = vmatpush.msra.mxu0 0.0
    %172 = vmatpush.msra.mxu0 0.0
    %173 = vmatpush.msra.mxu0 0.0
    %174 = vmatpush.msra.mxu0 0.0
    %175 = vmatpush.msra.mxu0 0.0
    %176 = vmatpush.msra.mxu0 0.0
    %v177 = vand.u32 %v65, 4294901760
    %178 = vmatpush.msra.mxu0 %v177
    %v179 = vand.u32 %v62, 4294901760
    %180 = vmatpush.msra.mxu0 %v179
    %v181 = vand.u32 %v59, 4294901760
    %182 = vmatpush.msra.mxu0 %v181
    %v183 = vand.u32 %v70, 4294901760
    %v184 = vsub.f32 %v70, %v183
    %v185 = vand.u32 %v184, 4294901760
    %186 = vmatmul.f32.gmra.mxu0 %v185
    %v187 = vpop.f32.mrf.mxu0
    %v188 = vadd.f32 %v162, %v187
    %189 = vdwg.mxu0
    %190 = vmatpush.msra.mxu0 0.0
    %191 = vmatpush.msra.mxu0 0.0
    %192 = vmatpush.msra.mxu0 0.0
    %193 = vmatpush.msra.mxu0 0.0
    %194 = vmatpush.msra.mxu0 0.0
    %195 = vmatpush.msra.mxu0 0.0
    %196 = vmatpush.msra.mxu0 0.0
    %197 = vmatpush.msra.mxu0 0.0
    %198 = vmatpush.msra.mxu0 0.0
    %199 = vmatpush.msra.mxu0 0.0
    %200 = vmatpush.msra.mxu0 0.0
    %201 = vmatpush.msra.mxu0 0.0
    %202 = vmatpush.msra.mxu0 0.0
    %v203 = vand.u32 %v65, 4294901760
    %v204 = vsub.f32 %v65, %v203
    %v205 = vand.u32 %v204, 4294901760
    %206 = vmatpush.msra.mxu0 %v205
    %v207 = vand.u32 %v62, 4294901760
    %v208 = vsub.f32 %v62, %v207
    %v209 = vand.u32 %v208, 4294901760
    %210 = vmatpush.msra.mxu0 %v209
    %v211 = vand.u32 %v59, 4294901760
    %v212 = vsub.f32 %v59, %v211
    %v213 = vand.u32 %v212, 4294901760
    %214 = vmatpush.msra.mxu0 %v213
    %v215 = vand.u32 %v70, 4294901760
    %216 = vmatmul.f32.gmra.mxu0 %v215
    %v217 = vpop.f32.mrf.mxu0
    %v218 = vadd.f32 %v188, %v217
    %219 = vdwg.mxu0
    %220 = vmatpush.msra.mxu0 0.0
    %221 = vmatpush.msra.mxu0 0.0
    %222 = vmatpush.msra.mxu0 0.0
    %223 = vmatpush.msra.mxu0 0.0
    %224 = vmatpush.msra.mxu0 0.0
    %225 = vmatpush.msra.mxu0 0.0
    %226 = vmatpush.msra.mxu0 0.0
    %227 = vmatpush.msra.mxu0 0.0
    %228 = vmatpush.msra.mxu0 0.0
    %229 = vmatpush.msra.mxu0 0.0
    %230 = vmatpush.msra.mxu0 0.0
    %231 = vmatpush.msra.mxu0 0.0
    %232 = vmatpush.msra.mxu0 0.0
    %v233 = vand.u32 %v65, 4294901760
    %234 = vmatpush.msra.mxu0 %v233
    %v235 = vand.u32 %v62, 4294901760
    %236 = vmatpush.msra.mxu0 %v235
    %v237 = vand.u32 %v59, 4294901760
    %238 = vmatpush.msra.mxu0 %v237
    %v239 = vand.u32 %v70, 4294901760
    %240 = vmatmul.f32.gmra.mxu0 %v239
    %v241 = vpop.f32.mrf.mxu0
    %v242 = vadd.f32 %v218, %v241
    %243 = vdwg.mxu0
    %244 = vmatpush.msra.mxu0 0.0
    %245 = vmatpush.msra.mxu0 0.0
    %246 = vmatpush.msra.mxu0 0.0
    %247 = vmatpush.msra.mxu0 0.0
    %248 = vmatpush.msra.mxu0 0.0
    %249 = vmatpush.msra.mxu0 0.0
    %250 = vmatpush.msra.mxu0 0.0
    %251 = vmatpush.msra.mxu0 0.0
    %252 = vmatpush.msra.mxu0 0.0
    %253 = vmatpush.msra.mxu0 0.0
    %254 = vmatpush.msra.mxu0 0.0
    %255 = vmatpush.msra.mxu0 0.0
    %256 = vmatpush.msra.mxu0 0.0
    %v257 = vand.u32 %v66, 4294901760
    %258 = vmatpush.msra.mxu0 %v257
    %v259 = vand.u32 %v63, 4294901760
    %260 = vmatpush.msra.mxu0 %v259
    %v261 = vand.u32 %v60, 4294901760
    %262 = vmatpush.msra.mxu0 %v261
    %v263 = vand.u32 %v70, 4294901760
    %v264 = vsub.f32 %v70, %v263
    %v265 = vand.u32 %v264, 4294901760
    %v266 = vsub.f32 %v264, %v265
    %v267 = vand.u32 %v266, 4294901760
    %268 = vmatmul.f32.gmra.mxu0 %v267
    %v269 = vpop.f32.mrf.mxu0
    %v270 = vadd.f32 0.0, %v269
    %271 = vdwg.mxu0
    %272 = vmatpush.msra.mxu0 0.0
    %273 = vmatpush.msra.mxu0 0.0
    %274 = vmatpush.msra.mxu0 0.0
    %275 = vmatpush.msra.mxu0 0.0
    %276 = vmatpush.msra.mxu0 0.0
    %277 = vmatpush.msra.mxu0 0.0
    %278 = vmatpush.msra.mxu0 0.0
    %279 = vmatpush.msra.mxu0 0.0
    %280 = vmatpush.msra.mxu0 0.0
    %281 = vmatpush.msra.mxu0 0.0
    %282 = vmatpush.msra.mxu0 0.0
    %283 = vmatpush.msra.mxu0 0.0
    %284 = vmatpush.msra.mxu0 0.0
    %v285 = vand.u32 %v66, 4294901760
    %v286 = vsub.f32 %v66, %v285
    %v287 = vand.u32 %v286, 4294901760
    %v288 = vsub.f32 %v286, %v287
    %v289 = vand.u32 %v288, 4294901760
    %290 = vmatpush.msra.mxu0 %v289
    %v291 = vand.u32 %v63, 4294901760
    %v292 = vsub.f32 %v63, %v291
    %v293 = vand.u32 %v292, 4294901760
    %v294 = vsub.f32 %v292, %v293
    %v295 = vand.u32 %v294, 4294901760
    %296 = vmatpush.msra.mxu0 %v295
    %v297 = vand.u32 %v60, 4294901760
    %v298 = vsub.f32 %v60, %v297
    %v299 = vand.u32 %v298, 4294901760
    %v300 = vsub.f32 %v298, %v299
    %v301 = vand.u32 %v300, 4294901760
    %302 = vmatpush.msra.mxu0 %v301
    %v303 = vand.u32 %v70, 4294901760
    %304 = vmatmul.f32.gmra.mxu0 %v303
    %v305 = vpop.f32.mrf.mxu0
    %v306 = vadd.f32 %v270, %v305
    %307 = vdwg.mxu0
    %308 = vmatpush.msra.mxu0 0.0
    %309 = vmatpush.msra.mxu0 0.0
    %310 = vmatpush.msra.mxu0 0.0
    %311 = vmatpush.msra.mxu0 0.0
    %312 = vmatpush.msra.mxu0 0.0
    %313 = vmatpush.msra.mxu0 0.0
    %314 = vmatpush.msra.mxu0 0.0
    %315 = vmatpush.msra.mxu0 0.0
    %316 = vmatpush.msra.mxu0 0.0
    %317 = vmatpush.msra.mxu0 0.0
    %318 = vmatpush.msra.mxu0 0.0
    %319 = vmatpush.msra.mxu0 0.0
    %320 = vmatpush.msra.mxu0 0.0
    %v321 = vand.u32 %v66, 4294901760
    %v322 = vsub.f32 %v66, %v321
    %323 = vmatpush.msra.mxu0 %v322
    %v324 = vand.u32 %v63, 4294901760
    %v325 = vsub.f32 %v63, %v324
    %326 = vmatpush.msra.mxu0 %v325
    %v327 = vand.u32 %v60, 4294901760
    %v328 = vsub.f32 %v60, %v327
    %329 = vmatpush.msra.mxu0 %v328
    %v330 = vand.u32 %v70, 4294901760
    %v331 = vsub.f32 %v70, %v330
    %332 = vmatmul.f32.gmra.mxu0 %v331
    %v333 = vpop.f32.mrf.mxu0
    %v334 = vadd.f32 %v306, %v333
    %335 = vdwg.mxu0
    %336 = vmatpush.msra.mxu0 0.0
    %337 = vmatpush.msra.mxu0 0.0
    %338 = vmatpush.msra.mxu0 0.0
    %339 = vmatpush.msra.mxu0 0.0
    %340 = vmatpush.msra.mxu0 0.0
    %341 = vmatpush.msra.mxu0 0.0
    %342 = vmatpush.msra.mxu0 0.0
    %343 = vmatpush.msra.mxu0 0.0
    %344 = vmatpush.msra.mxu0 0.0
    %345 = vmatpush.msra.mxu0 0.0
    %346 = vmatpush.msra.mxu0 0.0
    %347 = vmatpush.msra.mxu0 0.0
    %348 = vmatpush.msra.mxu0 0.0
    %v349 = vand.u32 %v66, 4294901760
    %350 = vmatpush.msra.mxu0 %v349
    %v351 = vand.u32 %v63, 4294901760
    %352 = vmatpush.msra.mxu0 %v351
    %v353 = vand.u32 %v60, 4294901760
    %354 = vmatpush.msra.mxu0 %v353
    %v355 = vand.u32 %v70, 4294901760
    %v356 = vsub.f32 %v70, %v355
    %v357 = vand.u32 %v356, 4294901760
    %358 = vmatmul.f32.gmra.mxu0 %v357
    %v359 = vpop.f32.mrf.mxu0
    %v360 = vadd.f32 %v334, %v359
    %361 = vdwg.mxu0
    %362 = vmatpush.msra.mxu0 0.0
    %363 = vmatpush.msra.mxu0 0.0
    %364 = vmatpush.msra.mxu0 0.0
    %365 = vmatpush.msra.mxu0 0.0
    %366 = vmatpush.msra.mxu0 0.0
    %367 = vmatpush.msra.mxu0 0.0
    %368 = vmatpush.msra.mxu0 0.0
    %369 = vmatpush.msra.mxu0 0.0
    %370 = vmatpush.msra.mxu0 0.0
    %371 = vmatpush.msra.mxu0 0.0
    %372 = vmatpush.msra.mxu0 0.0
    %373 = vmatpush.msra.mxu0 0.0
    %374 = vmatpush.msra.mxu0 0.0
    %v375 = vand.u32 %v66, 4294901760
    %v376 = vsub.f32 %v66, %v375
    %v377 = vand.u32 %v376, 4294901760
    %378 = vmatpush.msra.mxu0 %v377
    %v379 = vand.u32 %v63, 4294901760
    %v380 = vsub.f32 %v63, %v379
    %v381 = vand.u32 %v380, 4294901760
    %382 = vmatpush.msra.mxu0 %v381
    %v383 = vand.u32 %v60, 4294901760
    %v384 = vsub.f32 %v60, %v383
    %v385 = vand.u32 %v384, 4294901760
    %386 = vmatpush.msra.mxu0 %v385
    %v387 = vand.u32 %v70, 4294901760
    %388 = vmatmul.f32.gmra.mxu0 %v387
    %v389 = vpop.f32.mrf.mxu0
    %v390 = vadd.f32 %v360, %v389
    %391 = vdwg.mxu0
    %392 = vmatpush.msra.mxu0 0.0
    %393 = vmatpush.msra.mxu0 0.0
    %394 = vmatpush.msra.mxu0 0.0
    %395 = vmatpush.msra.mxu0 0.0
    %396 = vmatpush.msra.mxu0 0.0
    %397 = vmatpush.msra.mxu0 0.0
    %398 = vmatpush.msra.mxu0 0.0
    %399 = vmatpush.msra.mxu0 0.0
    %400 = vmatpush.msra.mxu0 0.0
    %401 = vmatpush.msra.mxu0 0.0
    %402 = vmatpush.msra.mxu0 0.0
    %403 = vmatpush.msra.mxu0 0.0
    %404 = vmatpush.msra.mxu0 0.0
    %v405 = vand.u32 %v66, 4294901760
    %406 = vmatpush.msra.mxu0 %v405
    %v407 = vand.u32 %v63, 4294901760
    %408 = vmatpush.msra.mxu0 %v407
    %v409 = vand.u32 %v60, 4294901760
    %410 = vmatpush.msra.mxu0 %v409
    %v411 = vand.u32 %v70, 4294901760
    %412 = vmatmul.f32.gmra.mxu0 %v411
    %v413 = vpop.f32.mrf.mxu0
    %v414 = vadd.f32 %v390, %v413
    %415 = vdwg.mxu0
    %416 = vmatpush.msra.mxu0 0.0
    %417 = vmatpush.msra.mxu0 0.0
    %418 = vmatpush.msra.mxu0 0.0
    %419 = vmatpush.msra.mxu0 0.0
    %420 = vmatpush.msra.mxu0 0.0
    %421 = vmatpush.msra.mxu0 0.0
    %422 = vmatpush.msra.mxu0 0.0
    %423 = vmatpush.msra.mxu0 0.0
    %424 = vmatpush.msra.mxu0 0.0
    %425 = vmatpush.msra.mxu0 0.0
    %426 = vmatpush.msra.mxu0 0.0
    %427 = vmatpush.msra.mxu0 0.0
    %428 = vmatpush.msra.mxu0 0.0
    %v429 = vand.u32 %v67, 4294901760
    %430 = vmatpush.msra.mxu0 %v429
    %v431 = vand.u32 %v64, 4294901760
    %432 = vmatpush.msra.mxu0 %v431
    %v433 = vand.u32 %v61, 4294901760
    %434 = vmatpush.msra.mxu0 %v433
    %v435 = vand.u32 %v70, 4294901760
    %v436 = vsub.f32 %v70, %v435
    %v437 = vand.u32 %v436, 4294901760
    %v438 = vsub.f32 %v436, %v437
    %v439 = vand.u32 %v438, 4294901760
    %440 = vmatmul.f32.gmra.mxu0 %v439
    %v441 = vpop.f32.mrf.mxu0
    %v442 = vadd.f32 0.0, %v441
    %443 = vdwg.mxu0
    %444 = vmatpush.msra.mxu0 0.0
    %445 = vmatpush.msra.mxu0 0.0
    %446 = vmatpush.msra.mxu0 0.0
    %447 = vmatpush.msra.mxu0 0.0
    %448 = vmatpush.msra.mxu0 0.0
    %449 = vmatpush.msra.mxu0 0.0
    %450 = vmatpush.msra.mxu0 0.0
    %451 = vmatpush.msra.mxu0 0.0
    %452 = vmatpush.msra.mxu0 0.0
    %453 = vmatpush.msra.mxu0 0.0
    %454 = vmatpush.msra.mxu0 0.0
    %455 = vmatpush.msra.mxu0 0.0
    %456 = vmatpush.msra.mxu0 0.0
    %v457 = vand.u32 %v67, 4294901760
    %v458 = vsub.f32 %v67, %v457
    %v459 = vand.u32 %v458, 4294901760
    %v460 = vsub.f32 %v458, %v459
    %v461 = vand.u32 %v460, 4294901760
    %462 = vmatpush.msra.mxu0 %v461
    %v463 = vand.u32 %v64, 4294901760
    %v464 = vsub.f32 %v64, %v463
    %v465 = vand.u32 %v464, 4294901760
    %v466 = vsub.f32 %v464, %v465
    %v467 = vand.u32 %v466, 4294901760
    %468 = vmatpush.msra.mxu0 %v467
    %v469 = vand.u32 %v61, 4294901760
    %v470 = vsub.f32 %v61, %v469
    %v471 = vand.u32 %v470, 4294901760
    %v472 = vsub.f32 %v470, %v471
    %v473 = vand.u32 %v472, 4294901760
    %474 = vmatpush.msra.mxu0 %v473
    %v475 = vand.u32 %v70, 4294901760
    %476 = vmatmul.f32.gmra.mxu0 %v475
    %v477 = vpop.f32.mrf.mxu0
    %v478 = vadd.f32 %v442, %v477
    %479 = vdwg.mxu0
    %480 = vmatpush.msra.mxu0 0.0
    %481 = vmatpush.msra.mxu0 0.0
    %482 = vmatpush.msra.mxu0 0.0
    %483 = vmatpush.msra.mxu0 0.0
    %484 = vmatpush.msra.mxu0 0.0
    %485 = vmatpush.msra.mxu0 0.0
    %486 = vmatpush.msra.mxu0 0.0
    %487 = vmatpush.msra.mxu0 0.0
    %488 = vmatpush.msra.mxu0 0.0
    %489 = vmatpush.msra.mxu0 0.0
    %490 = vmatpush.msra.mxu0 0.0
    %491 = vmatpush.msra.mxu0 0.0
    %492 = vmatpush.msra.mxu0 0.0
    %v493 = vand.u32 %v67, 4294901760
    %v494 = vsub.f32 %v67, %v493
    %495 = vmatpush.msra.mxu0 %v494
    %v496 = vand.u32 %v64, 4294901760
    %v497 = vsub.f32 %v64, %v496
    %498 = vmatpush.msra.mxu0 %v497
    %v499 = vand.u32 %v61, 4294901760
    %v500 = vsub.f32 %v61, %v499
    %501 = vmatpush.msra.mxu0 %v500
    %v502 = vand.u32 %v70, 4294901760
    %v503 = vsub.f32 %v70, %v502
    %504 = vmatmul.f32.gmra.mxu0 %v503
    %v505 = vpop.f32.mrf.mxu0
    %v506 = vadd.f32 %v478, %v505
    %507 = vdwg.mxu0
    %508 = vmatpush.msra.mxu0 0.0
    %509 = vmatpush.msra.mxu0 0.0
    %510 = vmatpush.msra.mxu0 0.0
    %511 = vmatpush.msra.mxu0 0.0
    %512 = vmatpush.msra.mxu0 0.0
    %513 = vmatpush.msra.mxu0 0.0
    %514 = vmatpush.msra.mxu0 0.0
    %515 = vmatpush.msra.mxu0 0.0
    %516 = vmatpush.msra.mxu0 0.0
    %517 = vmatpush.msra.mxu0 0.0
    %518 = vmatpush.msra.mxu0 0.0
    %519 = vmatpush.msra.mxu0 0.0
    %520 = vmatpush.msra.mxu0 0.0
    %v521 = vand.u32 %v67, 4294901760
    %522 = vmatpush.msra.mxu0 %v521
    %v523 = vand.u32 %v64, 4294901760
    %524 = vmatpush.msra.mxu0 %v523
    %v525 = vand.u32 %v61, 4294901760
    %526 = vmatpush.msra.mxu0 %v525
    %v527 = vand.u32 %v70, 4294901760
    %v528 = vsub.f32 %v70, %v527
    %v529 = vand.u32 %v528, 4294901760
    %530 = vmatmul.f32.gmra.mxu0 %v529
    %v531 = vpop.f32.mrf.mxu0
    %v532 = vadd.f32 %v506, %v531
    %533 = vdwg.mxu0
    %534 = vmatpush.msra.mxu0 0.0
    %535 = vmatpush.msra.mxu0 0.0
    %536 = vmatpush.msra.mxu0 0.0
    %537 = vmatpush.msra.mxu0 0.0
    %538 = vmatpush.msra.mxu0 0.0
    %539 = vmatpush.msra.mxu0 0.0
    %540 = vmatpush.msra.mxu0 0.0
    %541 = vmatpush.msra.mxu0 0.0
    %542 = vmatpush.msra.mxu0 0.0
    %543 = vmatpush.msra.mxu0 0.0
    %544 = vmatpush.msra.mxu0 0.0
    %545 = vmatpush.msra.mxu0 0.0
    %546 = vmatpush.msra.mxu0 0.0
    %v547 = vand.u32 %v67, 4294901760
    %v548 = vsub.f32 %v67, %v547
    %v549 = vand.u32 %v548, 4294901760
    %550 = vmatpush.msra.mxu0 %v549
    %v551 = vand.u32 %v64, 4294901760
    %v552 = vsub.f32 %v64, %v551
    %v553 = vand.u32 %v552, 4294901760
    %554 = vmatpush.msra.mxu0 %v553
    %v555 = vand.u32 %v61, 4294901760
    %v556 = vsub.f32 %v61, %v555
    %v557 = vand.u32 %v556, 4294901760
    %558 = vmatpush.msra.mxu0 %v557
    %v559 = vand.u32 %v70, 4294901760
    %560 = vmatmul.f32.gmra.mxu0 %v559
    %v561 = vpop.f32.mrf.mxu0
    %v562 = vadd.f32 %v532, %v561
    %563 = vdwg.mxu0
    %564 = vmatpush.msra.mxu0 0.0
    %565 = vmatpush.msra.mxu0 0.0
    %566 = vmatpush.msra.mxu0 0.0
    %567 = vmatpush.msra.mxu0 0.0
    %568 = vmatpush.msra.mxu0 0.0
    %569 = vmatpush.msra.mxu0 0.0
    %570 = vmatpush.msra.mxu0 0.0
    %571 = vmatpush.msra.mxu0 0.0
    %572 = vmatpush.msra.mxu0 0.0
    %573 = vmatpush.msra.mxu0 0.0
    %574 = vmatpush.msra.mxu0 0.0
    %575 = vmatpush.msra.mxu0 0.0
    %576 = vmatpush.msra.mxu0 0.0
    %v577 = vand.u32 %v67, 4294901760
    %578 = vmatpush.msra.mxu0 %v577
    %v579 = vand.u32 %v64, 4294901760
    %580 = vmatpush.msra.mxu0 %v579
    %v581 = vand.u32 %v61, 4294901760
    %582 = vmatpush.msra.mxu0 %v581
    %v583 = vand.u32 %v70, 4294901760
    %584 = vmatmul.f32.gmra.mxu0 %v583
    %v585 = vpop.f32.mrf.mxu0
    %v586 = vadd.f32 %v562, %v585
    %587 = vdwg.mxu0
    %v588 = vand.u32 2147483647, %v242
    %vm589 = vcmp.le.f32.partialorder %v588, 0.7853982
    %vm590 = vcmp.lt.s32.totalorder %v242, 0
    %v591 = vand.u32 %v242, 2139095040
    %v592 = vshrl.u32 %v591, 23
    %v593 = vsub.s32 %v592, 127
    %v594 = vand.u32 2147483647, %v242
    %v595 = vand.u32 %v594, 8388607
    %v596 = vor.u32 %v595, 8388608
    %v597 = vsub.s32 0, %v596
    %v598 = vadd.s32 %v593, 1
    %vm599 = vcmp.gt.s32.totalorder %v598, 0
    %v600 = vsel %vm599, %v598, 0
    %v601 = vshrl.u32 %v600, 5
    %v602 = vand.u32 %v600, 31
    %v603 = vsub.s32 32, %v602
    %v604 = vshrl.u32 683565275, %v603
    %v605 = vshll.u32 683565275, %v602
    %v606 = vshrl.u32 2475754826, %v603
    %v607 = vor.u32 %v605, %v606
    %v608 = vshll.u32 2475754826, %v602
    %v609 = vshrl.u32 2131351028, %v603
    %v610 = vor.u32 %v608, %v609
    %v611 = vshll.u32 2131351028, %v602
    %v612 = vshrl.u32 2102212464, %v603
    %v613 = vor.u32 %v611, %v612
    %v614 = vshll.u32 2102212464, %v602
    %v615 = vshrl.u32 920167782, %v603
    %v616 = vor.u32 %v614, %v615
    %v617 = vshll.u32 920167782, %v602
    %v618 = vshrl.u32 1326507024, %v603
    %v619 = vor.u32 %v617, %v618
    %vm620 = vcmp.lt.s32.totalorder %v601, 1
    %vm621 = vcmp.lt.s32.totalorder %v601, 2
    %vm622 = vcmp.lt.s32.totalorder %v601, 3
    %vm623 = vcmp.lt.s32.totalorder %v601, 4
    %v624 = vsel %vm620, %v604, %v607
    %v625 = vsel %vm623, %v613, 2102212464
    %v626 = vsel %vm622, %v610, %v625
    %v627 = vsel %vm621, %v624, %v626
    %v628 = vsel %vm620, %v607, %v610
    %v629 = vsel %vm623, %v616, 920167782
    %v630 = vsel %vm622, %v613, %v629
    %v631 = vsel %vm621, %v628, %v630
    %v632 = vsel %vm620, %v610, %v613
    %v633 = vsel %vm623, %v619, 1326507024
    %v634 = vsel %vm622, %v616, %v633
    %v635 = vsel %vm621, %v632, %v634
    %v636 = vshll.u32 %v596, 8
    %v637 = vand.u32 %v636, 65535
    %v638 = vshrl.u32 %v636, 16
    %v639 = vand.u32 %v635, 65535
    %v640 = vshrl.u32 %v635, 16
    %v641 = vmul.u32 %v637, %v639
    %v642 = vmul.u32 %v637, %v640
    %v643 = vmul.u32 %v638, %v639
    %v644 = vmul.u32 %v638, %v640
    %v645 = vshll.u32 %v642, 16
    %v646 = vshrl.u32 %v642, 16
    %v647 = vshll.u32 %v643, 16
    %v648 = vshrl.u32 %v643, 16
    %vm649 = vc.u32 %v641, %v645
    %v650 = vsel %vm649, 1, 0
    %v651 = vadd.s32 %v641, %v645
    %v652 = vadd.s32 %v644, %v650
    %vm653 = vc.u32 %v651, %v647
    %v654 = vsel %vm653, 1, 0
    %v655 = vadd.s32 %v651, %v647
    %v656 = vadd.s32 %v652, %v654
    %v657 = vadd.s32 %v656, %v646
    %v658 = vadd.s32 %v657, %v648
    %v659 = vand.u32 %v636, 65535
    %v660 = vshrl.u32 %v636, 16
    %v661 = vand.u32 %v631, 65535
    %v662 = vshrl.u32 %v631, 16
    %v663 = vmul.u32 %v659, %v661
    %v664 = vmul.u32 %v659, %v662
    %v665 = vmul.u32 %v660, %v661
    %v666 = vmul.u32 %v660, %v662
    %v667 = vshll.u32 %v664, 16
    %v668 = vshrl.u32 %v664, 16
    %v669 = vshll.u32 %v665, 16
    %v670 = vshrl.u32 %v665, 16
    %vm671 = vc.u32 %v663, %v667
    %v672 = vsel %vm671, 1, 0
    %v673 = vadd.s32 %v663, %v667
    %v674 = vadd.s32 %v666, %v672
    %vm675 = vc.u32 %v673, %v669
    %v676 = vsel %vm675, 1, 0
    %v677 = vadd.s32 %v673, %v669
    %v678 = vadd.s32 %v674, %v676
    %v679 = vadd.s32 %v678, %v668
    %v680 = vadd.s32 %v679, %v670
    %v681 = vmul.u32 %v636, %v627
    %v682 = vadd.s32 %v658, %v677
    %vm683 = vc.u32 %v658, %v677
    %v684 = vadd.s32 %v680, 1
    %v685 = vsel %vm683, %v684, %v680
    %v686 = vadd.s32 %v681, %v685
    %v687 = vadd.s32 %v686, 536870912
    %v688 = vshrl.u32 %v687, 30
    %v689 = vshll.u32 %v688, 30
    %v690 = vsub.s32 %v686, %v689
    %vm691 = vcmp.lt.s32.totalorder %v690, 0
    %v692 = vsub.s32 0, %v690
    %v693 = vsel %vm691, %v692, %v690
    %v694 = vclz %v693
    %v695 = vsub.s32 %v694, 2
    %vm696 = vcmp.gt.s32.totalorder 0, %v695
    %v697 = vsel %vm696, 0, %v695
    %v698 = vsub.s32 32, %v697
    %v699 = vshll.u32 %v690, %v697
    %v700 = vshrl.u32 %v682, %v698
    %v701 = vor.u32 %v699, %v700
    %v702 = vsub.s32 4294967266, %v697
    %v703 = vadd.s32 %v702, 127
    %v704 = vshll.u32 %v703, 23
    %v705 = vor.u32 4788187, %v704
    %v706 = vand.u32 2147483647, %v705
    %v708 = vcvt.s32.f32 %v701
    %v709 = vmul.f32 %v708, %v706
    %v710 = vxor.u32 %v709, 2147483648
    %v711 = vsel %vm590, %v710, %v709
    %v712 = vsub.s32 4, %v688
    %v713 = vsel %vm590, %v712, %v688
    %v714 = vsel %vm589, %v242, %v711
    %v715 = vsel %vm589, 0, %v713
    %v716 = vmul.f32 %v714, %v714
    %v717 = vmul.f32 %v716, -0.001358992
    %v718 = vadd.f32 %v717, 0.041655596
    %v719 = vmul.f32 %v716, %v718
    %v720 = vadd.f32 %v719, -0.4999988
    %v721 = vmul.f32 %v716, %v720
    %v722 = vadd.f32 1.0, %v721
    %v723 = vmul.f32 %v714, %v714
    %v724 = vmul.f32 %v723, -0.00019511016
    %v725 = vadd.f32 %v724, 0.008332121
    %v726 = vmul.f32 %v723, %v725
    %v727 = vadd.f32 %v726, -0.16666654
    %v728 = vmul.f32 %v723, %v727
    %v729 = vadd.f32 %v728, 1.0
    %v730 = vmul.f32 %v729, %v714
    %vm731 = vweird.f32 %v242
    %v732 = vadd.s32 %v715, 3
    %v733 = vand.u32 %v732, 3
    %vm734 = vcmp.lt.s32.totalorder %v733, 2
    %vm735 = vcmp.eq.s32.totalorder %v733, 0
    %v736 = vxor.u32 %v730, 2147483648
    %v737 = vsel %vm735, %v722, %v736
    %vm738 = vcmp.eq.s32.totalorder %v733, 2
    %v739 = vxor.u32 %v722, 2147483648
    %v740 = vsel %vm738, %v739, %v730
    %v741 = vsel %vm734, %v737, %v740
    %v742 = vsel %vm731, nan, %v741
    %v743 = vand.u32 2147483647, %v242
    %vm744 = vcmp.le.f32.partialorder %v743, 0.7853982
    %vm745 = vcmp.lt.s32.totalorder %v242, 0
    %v746 = vand.u32 %v242, 2139095040
    %v747 = vshrl.u32 %v746, 23
    %v748 = vsub.s32 %v747, 127
    %v749 = vand.u32 2147483647, %v242
    %v750 = vand.u32 %v749, 8388607
    %v751 = vor.u32 %v750, 8388608
    %v752 = vsub.s32 0, %v751
    %v753 = vadd.s32 %v748, 1
    %vm754 = vcmp.gt.s32.totalorder %v753, 0
    %v755 = vsel %vm754, %v753, 0
    %v756 = vshrl.u32 %v755, 5
    %v757 = vand.u32 %v755, 31
    %v758 = vsub.s32 32, %v757
    %v759 = vshrl.u32 683565275, %v758
    %v760 = vshll.u32 683565275, %v757
    %v761 = vshrl.u32 2475754826, %v758
    %v762 = vor.u32 %v760, %v761
    %v763 = vshll.u32 2475754826, %v757
    %v764 = vshrl.u32 2131351028, %v758
    %v765 = vor.u32 %v763, %v764
    %v766 = vshll.u32 2131351028, %v757
    %v767 = vshrl.u32 2102212464, %v758
    %v768 = vor.u32 %v766, %v767
    %v769 = vshll.u32 2102212464, %v757
    %v770 = vshrl.u32 920167782, %v758
    %v771 = vor.u32 %v769, %v770
    %v772 = vshll.u32 920167782, %v757
    %v773 = vshrl.u32 1326507024, %v758
    %v774 = vor.u32 %v772, %v773
    %vm775 = vcmp.lt.s32.totalorder %v756, 1
    %vm776 = vcmp.lt.s32.totalorder %v756, 2
    %vm777 = vcmp.lt.s32.totalorder %v756, 3
    %vm778 = vcmp.lt.s32.totalorder %v756, 4
    %v779 = vsel %vm775, %v759, %v762
    %v780 = vsel %vm778, %v768, 2102212464
    %v781 = vsel %vm777, %v765, %v780
    %v782 = vsel %vm776, %v779, %v781
    %v783 = vsel %vm775, %v762, %v765
    %v784 = vsel %vm778, %v771, 920167782
    %v785 = vsel %vm777, %v768, %v784
    %v786 = vsel %vm776, %v783, %v785
    %v787 = vsel %vm775, %v765, %v768
    %v788 = vsel %vm778, %v774, 1326507024
    %v789 = vsel %vm777, %v771, %v788
    %v790 = vsel %vm776, %v787, %v789
    %v791 = vshll.u32 %v751, 8
    %v792 = vand.u32 %v791, 65535
    %v793 = vshrl.u32 %v791, 16
    %v794 = vand.u32 %v790, 65535
    %v795 = vshrl.u32 %v790, 16
    %v796 = vmul.u32 %v792, %v794
    %v797 = vmul.u32 %v792, %v795
    %v798 = vmul.u32 %v793, %v794
    %v799 = vmul.u32 %v793, %v795
    %v800 = vshll.u32 %v797, 16
    %v801 = vshrl.u32 %v797, 16
    %v802 = vshll.u32 %v798, 16
    %v803 = vshrl.u32 %v798, 16
    %vm804 = vc.u32 %v796, %v800
    %v805 = vsel %vm804, 1, 0
    %v806 = vadd.s32 %v796, %v800
    %v807 = vadd.s32 %v799, %v805
    %vm808 = vc.u32 %v806, %v802
    %v809 = vsel %vm808, 1, 0
    %v810 = vadd.s32 %v806, %v802
    %v811 = vadd.s32 %v807, %v809
    %v812 = vadd.s32 %v811, %v801
    %v813 = vadd.s32 %v812, %v803
    %v814 = vand.u32 %v791, 65535
    %v815 = vshrl.u32 %v791, 16
    %v816 = vand.u32 %v786, 65535
    %v817 = vshrl.u32 %v786, 16
    %v818 = vmul.u32 %v814, %v816
    %v819 = vmul.u32 %v814, %v817
    %v820 = vmul.u32 %v815, %v816
    %v821 = vmul.u32 %v815, %v817
    %v822 = vshll.u32 %v819, 16
    %v823 = vshrl.u32 %v819, 16
    %v824 = vshll.u32 %v820, 16
    %v825 = vshrl.u32 %v820, 16
    %vm826 = vc.u32 %v818, %v822
    %v827 = vsel %vm826, 1, 0
    %v828 = vadd.s32 %v818, %v822
    %v829 = vadd.s32 %v821, %v827
    %vm830 = vc.u32 %v828, %v824
    %v831 = vsel %vm830, 1, 0
    %v832 = vadd.s32 %v828, %v824
    %v833 = vadd.s32 %v829, %v831
    %v834 = vadd.s32 %v833, %v823
    %v835 = vadd.s32 %v834, %v825
    %v836 = vmul.u32 %v791, %v782
    %v837 = vadd.s32 %v813, %v832
    %vm838 = vc.u32 %v813, %v832
    %v839 = vadd.s32 %v835, 1
    %v840 = vsel %vm838, %v839, %v835
    %v841 = vadd.s32 %v836, %v840
    %v842 = vadd.s32 %v841, 536870912
    %v843 = vshrl.u32 %v842, 30
    %v844 = vshll.u32 %v843, 30
    %v845 = vsub.s32 %v841, %v844
    %vm846 = vcmp.lt.s32.totalorder %v845, 0
    %v847 = vsub.s32 0, %v845
    %v848 = vsel %vm846, %v847, %v845
    %v849 = vclz %v848
    %v850 = vsub.s32 %v849, 2
    %vm851 = vcmp.gt.s32.totalorder 0, %v850
    %v852 = vsel %vm851, 0, %v850
    %v853 = vsub.s32 32, %v852
    %v854 = vshll.u32 %v845, %v852
    %v855 = vshrl.u32 %v837, %v853
    %v856 = vor.u32 %v854, %v855
    %v857 = vsub.s32 4294967266, %v852
    %v858 = vadd.s32 %v857, 127
    %v859 = vshll.u32 %v858, 23
    %v860 = vor.u32 4788187, %v859
    %v861 = vand.u32 2147483647, %v860
    %v863 = vcvt.s32.f32 %v856
    %v864 = vmul.f32 %v863, %v861
    %v865 = vxor.u32 %v864, 2147483648
    %v866 = vsel %vm745, %v865, %v864
    %v867 = vsub.s32 4, %v843
    %v868 = vsel %vm745, %v867, %v843
    %v869 = vsel %vm744, %v242, %v866
    %v870 = vsel %vm744, 0, %v868
    %v871 = vmul.f32 %v869, %v869
    %v872 = vmul.f32 %v871, -0.001358992
    %v873 = vadd.f32 %v872, 0.041655596
    %v874 = vmul.f32 %v871, %v873
    %v875 = vadd.f32 %v874, -0.4999988
    %v876 = vmul.f32 %v871, %v875
    %v877 = vadd.f32 1.0, %v876
    %v878 = vmul.f32 %v869, %v869
    %v879 = vmul.f32 %v878, -0.00019511016
    %v880 = vadd.f32 %v879, 0.008332121
    %v881 = vmul.f32 %v878, %v880
    %v882 = vadd.f32 %v881, -0.16666654
    %v883 = vmul.f32 %v878, %v882
    %v884 = vadd.f32 %v883, 1.0
    %v885 = vmul.f32 %v884, %v869
    %vm886 = vweird.f32 %v242
    %v887 = vand.u32 %v870, 3
    %vm888 = vcmp.lt.s32.totalorder %v887, 2
    %vm889 = vcmp.eq.s32.totalorder %v887, 0
    %v890 = vxor.u32 %v885, 2147483648
    %v891 = vsel %vm889, %v877, %v890
    %vm892 = vcmp.eq.s32.totalorder %v887, 2
    %v893 = vxor.u32 %v877, 2147483648
    %v894 = vsel %vm892, %v893, %v885
    %v895 = vsel %vm888, %v891, %v894
    %v896 = vsel %vm886, nan, %v895
    %v897 = vmul.f32 %v742, %v414
    %v898 = vld [vmem:[#allocation5] sm:$0x1]
    %v899 = vperm.slane %v898, 0
    %v900 = vmul.f32 %v899, %v897
    %v901 = vsub.f32 %v897, %v896
    %v902 = vmul.f32 %v901, %v414
    %v903 = vld [vmem:[#allocation5 + $0x1] sm:$0x1]
    %v904 = vperm.slane %v903, 0
    %v905 = vmul.f32 %v904, %v902
    %v906 = vadd.f32 %v900, %v905
    %v907 = vmul.f32 %v414, %v902
    %v908 = vmul.f32 %v907, 3.0
    %v909 = vsub.f32 %v908, %v897
    %v910 = vld [vmem:[#allocation5 + $0x2] sm:$0x1]
    %v911 = vperm.slane %v910, 0
    %v912 = vmul.f32 %v911, %v909
    %v913 = vadd.f32 %v906, %v912
    %v914 = vmul.f32 %v414, %v909
    %v915 = vmul.f32 %v914, 5.0
    %v916 = vsub.f32 %v915, %v902
    %v917 = vld [vmem:[#allocation5 + $0x3] sm:$0x1]
    %v918 = vperm.slane %v917, 0
    %v919 = vmul.f32 %v918, %v916
    %v920 = vadd.f32 %v913, %v919
    %v921 = vmul.f32 %v586, %v920
    %922 = vst [vmem:[#allocation8] sm:$0xff] %v921
    // Predicated region
    $region26: #{tpu_custom_call.1} parent=1 // pred_check
      _
    $region27: #{tpu_custom_call.1} parent=1 // pred_check_branch
      %924 = sbr.rel (0) target = $region29
    $region28: #{tpu_custom_call.1} parent=1 // pred_region
      %926 = vsyncadd [#allocation4], 0
      %s928 = sshll.u32 [#allocation8], 4
      %s929 = int_to_ptr.vmem [resolvable:$true] %s928
      %s930 = sshll.u32 %s3, 4
      %s931 = int_to_ptr.hbm [resolvable:$true] %s930
      %933 = dma.vmem_to_hbm [thread:$0]  %s929, 128, %s931, [#allocation4]
    $region29: #{tpu_custom_call.1} parent=1 // pred_fallthru
      _
    // Predicated region
    $region30: #{tpu_custom_call.1} parent=1 // pred_check
      _
    $region31: #{tpu_custom_call.1} parent=1 // pred_check_branch
      %935 = sbr.rel (0) target = $region33
    $region32: #{tpu_custom_call.1} parent=1 // pred_region
      %937 = dma.done [#allocation4], 128
    $region33: #{tpu_custom_call.1} parent=1 // pred_fallthru
      _
    %938 = vsyncpa [#allocation3], 1
    %939 = vsyncpa [#allocation6], 1
    %940 = vsyncpa [#allocation4], 1

</llo_original>
